<compile_context>
chip_gen: v7x
topology: tpu7x:2x2x1
jax: 0.10.0
libtpu: 0.0.40
codegen_flags: <defaults>
</compile_context>

<pallas_src>
import functools
import math

import jax
import jax.numpy as jnp
from jax.experimental import pallas as pl
from jax.experimental.pallas import tpu as pltpu

EPS = 1e-5

# Tile targets (f32): 2x(in) + 2x(out) double buffers plus in-kernel temps stay
# well under v7x's 64 MiB physical VMEM while being big enough to amortize
# per-step pipeline overhead and keep the MXU work memory-bound.
_TH_TARGET = 128                         # sublane (H) tile target
_TW_TARGET = 256                         # lane (packed-W) tile target
_TILE_BUDGET_BYTES = 2 * 1024 * 1024     # per x-tile budget
_VMEM_LIMIT_BYTES = 48 * 1024 * 1024     # > v5e's 16 MiB default, < v7x physical


def _block_ones(n: int, r: int) -> jax.Array:
    """(n, n) f32 matrix with M[i, j] = 1 iff i // r == j // r.

    Built from int iotas + f32 scale/truncate (no vector integer division):
    trunc((i + 0.5) / r) == i // r exactly for the integer ranges used here.
    """
    row = jax.lax.broadcasted_iota(jnp.int32, (n, n), 0).astype(jnp.float32)
    col = jax.lax.broadcasted_iota(jnp.int32, (n, n), 1).astype(jnp.float32)
    inv_r = 1.0 / float(r)
    row_b = ((row + 0.5) * inv_r).astype(jnp.int32)
    col_b = ((col + 0.5) * inv_r).astype(jnp.int32)
    return jnp.where(row_b == col_b, 1.0, 0.0).astype(jnp.float32)


def _n2_norm_kernel(x_ref, o_ref, *, r: int):
    b, th, tw = x_ref.shape
    x = x_ref[...].astype(jnp.float32)                 # (b, th, tw)

    lw = _block_ones(tw, r)                             # (tw, tw) lane-side op
    lh = _block_ones(th, r)                             # (th, th) sublane-side op

    # W-side block-sum + broadcast, fused over all b*th rows -> one MXU matmul
    # with a large M dimension.
    x2 = x.reshape(b * th, tw)
    y2 = jnp.dot(x2, lw, preferred_element_type=jnp.float32)   # (b*th, tw)

    if b == 1:
        den2 = jnp.dot(lh, y2, preferred_element_type=jnp.float32)
        out2 = x2 * pl.reciprocal(den2 + EPS, approx=False)
        o_ref[...] = out2.reshape(b, th, tw).astype(o_ref.dtype)
    else:
        # H-side block-sum + broadcast as a batched matmul (no transposes).
        y = y2.reshape(b, th, tw)
        lh_b = jnp.broadcast_to(lh, (b, th, th))
        den = jnp.einsum("bij,bjk->bik", lh_b, y,
                         preferred_element_type=jnp.float32)
        o_ref[...] = (x * pl.reciprocal(den + EPS, approx=False)).astype(o_ref.dtype)


def _choose_sublane_tile(total: int, r: int, target: int) -> int:
    """H tile: multiple of r (block locality) and 8 (layout) unless == total."""
    if total <= target:
        return total
    unit = r * 8 // math.gcd(r, 8)                      # lcm(r, 8)
    cands = [t for t in range(unit, target + 1, unit) if total % t == 0]
    return max(cands) if cands else total


def _choose_lane_tile(total: int, r: int, target: int) -> int:
    """Packed-W tile: multiple of r and of 128 (lane dense) unless == total."""
    if total <= target:
        return total
    unit = r * 128 // math.gcd(r, 128)                  # lcm(r, 128)
    cands = [t for t in range(unit, target + 1, unit) if total % t == 0]
    return max(cands) if cands else total


def n2_normalization(x: jax.Array, upscale_factor: int) -> jax.Array:
    """x: (N, C, H, W); H % r == 0 and W % r == 0 (as in the PyTorch module)."""
    n, c, h, w = x.shape
    r = int(upscale_factor)
    assert h % r == 0 and w % r == 0, "H and W must be multiples of r"
    nc = n * c

    # --- lane packing: put k planes side by side so the last dim is ~128.
    k = 1
    if w < 128:
        kmax = max(1, 128 // w)
        for cand in range(min(kmax, nc), 0, -1):
            if nc % cand == 0:
                k = cand
                break
    g = nc // k
    wk = k * w
    x_packed = x.reshape(g, k, h, w).transpose(0, 2, 1, 3).reshape(g, h, wk)

    # --- spatial tiles (multiples of r: r x r blocks never cross a tile).
    th = _choose_sublane_tile(h, r, _TH_TARGET)
    tw = _choose_lane_tile(wk, r, _TW_TARGET)
    n_h = h // th
    n_w = wk // tw

    # --- plane batch per grid step: fill the tile budget but keep >=2 grid
    #     steps when there is enough independent work (v7x has 2 TensorCores).
    max_b = max(1, _TILE_BUDGET_BYTES // (th * tw * 4))
    divisors = [d for d in range(1, g + 1) if g % d == 0 and d <= max_b]
    b = max(divisors)
    if (g // b) * n_h * n_w < 2:
        smaller = [d for d in divisors if (g // d) * n_h * n_w >= 2]
        if smaller:
            b = max(smaller)
    # The in-kernel reshape (b, th, tw) -> (b*th, tw) is layout-preserving only
    # when th is 8-aligned; otherwise fall back to one packed plane per step.
    if th % 8 != 0:
        b = 1

    grid = (g // b, n_h, n_w)
    spec = pl.BlockSpec((b, th, tw), lambda pi, hi, wi: (pi, hi, wi))

    out_packed = pl.pallas_call(
        functools.partial(_n2_norm_kernel, r=r),
        out_shape=jax.ShapeDtypeStruct((g, h, wk), x.dtype),
        grid=grid,
        in_specs=[spec],
        out_specs=spec,
        compiler_params=pltpu.CompilerParams(
            dimension_semantics=("parallel", "parallel", "parallel"),
            vmem_limit_bytes=_VMEM_LIMIT_BYTES,
        ),
    )(x_packed)

    return (out_packed.reshape(g, h, k, w)
                      .transpose(0, 2, 1, 3)
                      .reshape(n, c, h, w))


def _reference(x, r):
    # pure-JAX reference matching the PyTorch forward
    n, c, h, w = x.shape
    blocks = x.reshape(n, c, h // r, r, w // r, r)
    s = blocks.sum(axis=(3, 5))                            # avgpool * r**2
    up = jnp.repeat(jnp.repeat(s, r, axis=2), r, axis=3)   # nearest upsample
    return x / (up + EPS)


if __name__ == "__main__":
    key = jax.random.PRNGKey(0)

    # Primary case: the module's toy shapes. Positive inputs keep den + eps
    # well conditioned so the elementwise comparison is numerically meaningful
    # (zero-mean inputs can make den ~ -eps, which amplifies any benign
    # summation-order difference — same behavior as the PyTorch module).
    N, C, H, W, R = 2, 4, 16, 16, 4
    x = jax.random.uniform(key, (N, C, H, W), dtype=jnp.float32,
                           minval=0.5, maxval=1.5)
    out = jax.block_until_ready(n2_normalization(x, R))
    ref = _reference(x, R)
    assert out.shape == (N, C, H, W)
    assert jnp.allclose(out, ref, rtol=1e-5, atol=1e-5), float(
        jnp.max(jnp.abs(out - ref)))

    # Secondary case: wide planes (no lane packing) exercising the batched
    # (b > 1) path and a multi-step (megacore-friendly) grid.
    x2 = jax.random.uniform(jax.random.PRNGKey(0), (2, 4, 16, 256),
                            dtype=jnp.float32, minval=0.5, maxval=1.5)
    out2 = jax.block_until_ready(n2_normalization(x2, 4))
    ref2 = _reference(x2, 4)
    assert jnp.allclose(out2, ref2, rtol=1e-5, atol=1e-5), float(
        jnp.max(jnp.abs(out2 - ref2)))

    print("KERNEL_OK")
</pallas_src>

<mosaic_0001>
module attributes {stable_mosaic.version = 11 : i64} {
  func.func @_n2_norm_kernel(%arg0: i32, %arg1: i32, %arg2: i32, %arg3: memref<1x16x128xf32, #tpu.memory_space<vmem>>, %arg4: memref<1x16x128xf32, #tpu.memory_space<vmem>>) attributes {dimension_semantics = [#tpu.dimension_semantics<parallel>, #tpu.dimension_semantics<parallel>, #tpu.dimension_semantics<parallel>], iteration_bounds = array<i64: 1, 1, 1>, scalar_prefetch = 0 : i64, scratch_operands = 0 : i64, tpu.core_type = #tpu.core_type<tc>, window_params = [{transform_indices = @transform_0, window_bounds = array<i64: 1, 16, 128>}, {transform_indices = @transform_1, window_bounds = array<i64: 1, 16, 128>}]} {
    %c0 = arith.constant 0 : index
    %c0_0 = arith.constant 0 : index
    %c0_1 = arith.constant 0 : index
    %0 = vector.load %arg3[%c0, %c0_0, %c0_1] : memref<1x16x128xf32, #tpu.memory_space<vmem>>, vector<1x16x128xf32>
    %1 = tpu.iota {dimensions = array<i32: 0>} : vector<128x128xi32>
    %2 = arith.sitofp %1 : vector<128x128xi32> to vector<128x128xf32>
    %3 = tpu.iota {dimensions = array<i32: 1>} : vector<128x128xi32>
    %4 = arith.sitofp %3 : vector<128x128xi32> to vector<128x128xf32>
    %cst = arith.constant 5.000000e-01 : f32
    %5 = vector.broadcast %cst : f32 to vector<128x128xf32>
    %6 = arith.addf %2, %5 : vector<128x128xf32>
    %cst_2 = arith.constant 2.500000e-01 : f32
    %7 = vector.broadcast %cst_2 : f32 to vector<128x128xf32>
    %8 = arith.mulf %6, %7 : vector<128x128xf32>
    %9 = arith.fptosi %8 : vector<128x128xf32> to vector<128x128xi32>
    %cst_3 = arith.constant 5.000000e-01 : f32
    %10 = vector.broadcast %cst_3 : f32 to vector<128x128xf32>
    %11 = arith.addf %4, %10 : vector<128x128xf32>
    %cst_4 = arith.constant 2.500000e-01 : f32
    %12 = vector.broadcast %cst_4 : f32 to vector<128x128xf32>
    %13 = arith.mulf %11, %12 : vector<128x128xf32>
    %14 = arith.fptosi %13 : vector<128x128xf32> to vector<128x128xi32>
    %15 = arith.cmpi eq, %9, %14 : vector<128x128xi32>
    %cst_5 = arith.constant 1.000000e+00 : f32
    %cst_6 = arith.constant 0.000000e+00 : f32
    %16 = vector.broadcast %cst_5 : f32 to vector<128x128xf32>
    %17 = vector.broadcast %cst_6 : f32 to vector<128x128xf32>
    %18 = arith.select %15, %16, %17 : vector<128x128xi1>, vector<128x128xf32>
    %19 = tpu.iota {dimensions = array<i32: 0>} : vector<16x16xi32>
    %20 = arith.sitofp %19 : vector<16x16xi32> to vector<16x16xf32>
    %21 = tpu.iota {dimensions = array<i32: 1>} : vector<16x16xi32>
    %22 = arith.sitofp %21 : vector<16x16xi32> to vector<16x16xf32>
    %cst_7 = arith.constant 5.000000e-01 : f32
    %23 = vector.broadcast %cst_7 : f32 to vector<16x16xf32>
    %24 = arith.addf %20, %23 : vector<16x16xf32>
    %cst_8 = arith.constant 2.500000e-01 : f32
    %25 = vector.broadcast %cst_8 : f32 to vector<16x16xf32>
    %26 = arith.mulf %24, %25 : vector<16x16xf32>
    %27 = arith.fptosi %26 : vector<16x16xf32> to vector<16x16xi32>
    %cst_9 = arith.constant 5.000000e-01 : f32
    %28 = vector.broadcast %cst_9 : f32 to vector<16x16xf32>
    %29 = arith.addf %22, %28 : vector<16x16xf32>
    %cst_10 = arith.constant 2.500000e-01 : f32
    %30 = vector.broadcast %cst_10 : f32 to vector<16x16xf32>
    %31 = arith.mulf %29, %30 : vector<16x16xf32>
    %32 = arith.fptosi %31 : vector<16x16xf32> to vector<16x16xi32>
    %33 = arith.cmpi eq, %27, %32 : vector<16x16xi32>
    %cst_11 = arith.constant 1.000000e+00 : f32
    %cst_12 = arith.constant 0.000000e+00 : f32
    %34 = vector.broadcast %cst_11 : f32 to vector<16x16xf32>
    %35 = vector.broadcast %cst_12 : f32 to vector<16x16xf32>
    %36 = arith.select %33, %34, %35 : vector<16x16xi1>, vector<16x16xf32>
    %37 = vector.shape_cast %0 : vector<1x16x128xf32> to vector<16x128xf32>
    %cst_13 = arith.constant dense<0.000000e+00> : vector<16x128xf32>
    %38 = tpu.matmul %37, %18, %cst_13 {dimension_numbers = #tpu.dot_dimension_numbers<[1], [0], [0], [1], [0, 0, 1, 1], [], []>} : vector<16x128xf32>, vector<128x128xf32>, vector<16x128xf32> -> vector<16x128xf32>
    %cst_14 = arith.constant dense<0.000000e+00> : vector<16x128xf32>
    %39 = tpu.matmul %36, %38, %cst_14 {dimension_numbers = #tpu.dot_dimension_numbers<[1], [0], [0], [1], [0, 0, 1, 1], [], []>} : vector<16x16xf32>, vector<16x128xf32>, vector<16x128xf32> -> vector<16x128xf32>
    %cst_15 = arith.constant 9.99999974E-6 : f32
    %40 = vector.broadcast %cst_15 : f32 to vector<16x128xf32>
    %41 = arith.addf %39, %40 : vector<16x128xf32>
    %42 = tpu.reciprocal %41 : vector<16x128xf32> -> vector<16x128xf32>
    %43 = arith.mulf %37, %42 : vector<16x128xf32>
    %44 = vector.shape_cast %43 : vector<16x128xf32> to vector<1x16x128xf32>
    %c0_16 = arith.constant 0 : index
    %c0_17 = arith.constant 0 : index
    %c0_18 = arith.constant 0 : index
    %45 = vector.load %arg4[%c0_16, %c0_17, %c0_18] : memref<1x16x128xf32, #tpu.memory_space<vmem>>, vector<1x16x128xf32>
    tpu.vector_store %arg4[%c0_16, %c0_17, %c0_18], %44 {strides = array<i32>} : memref<1x16x128xf32, #tpu.memory_space<vmem>>, vector<1x16x128xf32>,
    return
  }
  func.func @transform_0(%arg0: i32, %arg1: i32, %arg2: i32) -> (i32, i32, i32) {
    %c0_i32 = arith.constant 0 : i32
    return %arg0, %arg1, %arg2 : i32, i32, i32
  }
  func.func @transform_1(%arg0: i32, %arg1: i32, %arg2: i32) -> (i32, i32, i32) {
    %c0_i32 = arith.constant 0 : i32
    return %arg0, %arg1, %arg2 : i32, i32, i32
  }
}

</mosaic_0001>

<llo_original>
// kernel: tpu_custom_call.1
$region0: #{tpu_custom_call.1}
  #allocation0 [shape = 'u32[]', space=smem, size = 0x4, offset = 0x4, fixed_abs, tag = 'smem constant byte address 0x4 - core index']
  #allocation1 [shape = 'u32[144,128]{1,0:T(1,128)}', space=vmem, size = 0x12000, scoped, tag = 'internal scratch']
  %s0 = inlined_call_operand.hbm [shape: f32[1,16,128], index: 0, kind: input, shape index: {}]
  %s1 = inlined_call_operand.hbm [shape: f32[1,16,128], index: 1, kind: output, shape index: {}]
  %s2 = sld [smem:[#allocation0]]
  $region18: #{tpu_custom_call.1} parent=0
    _
  %s4 = ssub.s32 1, %s2
  %s5 = scalar_select 0, %s4, %s2
  $region1: #{tpu_custom_call.1} parent=0
    #allocation2 [shape = 'u8[8192]{0}', space=vmem, size = 0x2000, scoped, tag = 'input window, operand 0, single buffered']
    #allocation3 [shape = 's32[1]{0}', space=sflag, size = 0x4, scoped, tag = 'scoped memory for tpu_custom_call.1']
    #allocation4 [shape = 's32[1]{0}', space=sflag, size = 0x4, scoped, tag = 'scoped memory for tpu_custom_call.1']
    #allocation5 [shape = 'u8[8192]{0}', space=vmem, size = 0x2000, scoped, tag = 'output window, operand 0, single buffered']
    %6 = vsyncpa [#allocation3], 0
    %7 = vsyncpa [#allocation4], 0
    // Predicated region
    $region2: #{tpu_custom_call.1} parent=1 // pred_check
      _
    $region3: #{tpu_custom_call.1} parent=1 // pred_check_branch
      %9 = sbr.rel (0) target = $region5
    $region4: #{tpu_custom_call.1} parent=1 // pred_region
      %s11 = ssub.s32 256, 256
      %12 = vsyncadd [#allocation3], %s11
      %s13 = sshll.u32 [#allocation2], 4
      %s14 = int_to_ptr.vmem [resolvable:$true] %s13
      %19 = dma.hbm_to_vmem [thread:$0]  %s0, 256, %s14, [#allocation3], 128, 128, 8
    $region5: #{tpu_custom_call.1} parent=1 // pred_fallthru
      _
    // Predicated region
    $region6: #{tpu_custom_call.1} parent=1 // pred_check
      _
    $region7: #{tpu_custom_call.1} parent=1 // pred_check_branch
      %21 = sbr.rel (0) target = $region9
    $region8: #{tpu_custom_call.1} parent=1 // pred_region
      %22 = dma.done [#allocation3], 256
    $region9: #{tpu_custom_call.1} parent=1 // pred_fallthru
      _
    %v23 = vld [vmem:[#allocation2] sm:$0xff]
    %v24 = vld [vmem:[#allocation2 + $0x8] sm:$0xff]
    %v25 = vlaneseq
    %v26 = vshrl.u32 %v25, 7
    %v27 = vadd.s32 %v26, 8
    %v28 = vadd.s32 %v26, 16
    %v29 = vadd.s32 %v26, 24
    %v30 = vadd.s32 %v26, 32
    %v31 = vadd.s32 %v26, 40
    %v32 = vadd.s32 %v26, 48
    %v33 = vadd.s32 %v26, 56
    %v34 = vadd.s32 %v26, 64
    %v35 = vadd.s32 %v26, 72
    %v36 = vadd.s32 %v26, 80
    %v37 = vadd.s32 %v26, 88
    %v38 = vadd.s32 %v26, 96
    %v39 = vadd.s32 %v26, 104
    %v40 = vadd.s32 %v26, 112
    %v41 = vadd.s32 %v26, 120
    %v42 = vcvt.s32.f32 %v26
    %v43 = vcvt.s32.f32 %v27
    %v44 = vcvt.s32.f32 %v28
    %v45 = vcvt.s32.f32 %v29
    %v46 = vcvt.s32.f32 %v30
    %v47 = vcvt.s32.f32 %v31
    %v48 = vcvt.s32.f32 %v32
    %v49 = vcvt.s32.f32 %v33
    %v50 = vcvt.s32.f32 %v34
    %v51 = vcvt.s32.f32 %v35
    %v52 = vcvt.s32.f32 %v36
    %v53 = vcvt.s32.f32 %v37
    %v54 = vcvt.s32.f32 %v38
    %v55 = vcvt.s32.f32 %v39
    %v56 = vcvt.s32.f32 %v40
    %v57 = vcvt.s32.f32 %v41
    %v58 = vlaneseq
    %v59 = vand.u32 %v58, 127
    %v60 = vcvt.s32.f32 %v59
    %v61 = vadd.f32 %v42, 0.5
    %v62 = vadd.f32 %v43, 0.5
    %v63 = vadd.f32 %v44, 0.5
    %v64 = vadd.f32 %v45, 0.5
    %v65 = vadd.f32 %v46, 0.5
    %v66 = vadd.f32 %v47, 0.5
    %v67 = vadd.f32 %v48, 0.5
    %v68 = vadd.f32 %v49, 0.5
    %v69 = vadd.f32 %v50, 0.5
    %v70 = vadd.f32 %v51, 0.5
    %v71 = vadd.f32 %v52, 0.5
    %v72 = vadd.f32 %v53, 0.5
    %v73 = vadd.f32 %v54, 0.5
    %v74 = vadd.f32 %v55, 0.5
    %v75 = vadd.f32 %v56, 0.5
    %v76 = vadd.f32 %v57, 0.5
    %v77 = vmul.f32 %v61, 0.25
    %v78 = vmul.f32 %v62, 0.25
    %v79 = vmul.f32 %v63, 0.25
    %v80 = vmul.f32 %v64, 0.25
    %v81 = vmul.f32 %v65, 0.25
    %v82 = vmul.f32 %v66, 0.25
    %v83 = vmul.f32 %v67, 0.25
    %v84 = vmul.f32 %v68, 0.25
    %v85 = vmul.f32 %v69, 0.25
    %v86 = vmul.f32 %v70, 0.25
    %v87 = vmul.f32 %v71, 0.25
    %v88 = vmul.f32 %v72, 0.25
    %v89 = vmul.f32 %v73, 0.25
    %v90 = vmul.f32 %v74, 0.25
    %v91 = vmul.f32 %v75, 0.25
    %v92 = vmul.f32 %v76, 0.25
    %v93 = vcvt.f32.s32.to.zero.pseudo %v77
    %v94 = vcvt.f32.s32.to.zero.pseudo %v78
    %v95 = vcvt.f32.s32.to.zero.pseudo %v79
    %v96 = vcvt.f32.s32.to.zero.pseudo %v80
    %v97 = vcvt.f32.s32.to.zero.pseudo %v81
    %v98 = vcvt.f32.s32.to.zero.pseudo %v82
    %v99 = vcvt.f32.s32.to.zero.pseudo %v83
    %v100 = vcvt.f32.s32.to.zero.pseudo %v84
    %v101 = vcvt.f32.s32.to.zero.pseudo %v85
    %v102 = vcvt.f32.s32.to.zero.pseudo %v86
    %v103 = vcvt.f32.s32.to.zero.pseudo %v87
    %v104 = vcvt.f32.s32.to.zero.pseudo %v88
    %v105 = vcvt.f32.s32.to.zero.pseudo %v89
    %v106 = vcvt.f32.s32.to.zero.pseudo %v90
    %v107 = vcvt.f32.s32.to.zero.pseudo %v91
    %v108 = vcvt.f32.s32.to.zero.pseudo %v92
    %v109 = vadd.f32 %v60, 0.5
    %v110 = vmul.f32 %v109, 0.25
    %v111 = vcvt.f32.s32.to.zero.pseudo %v110
    %vm112 = vcmp.eq.s32.totalorder %v93, %v111
    %vm113 = vcmp.eq.s32.totalorder %v94, %v111
    %vm114 = vcmp.eq.s32.totalorder %v95, %v111
    %vm115 = vcmp.eq.s32.totalorder %v96, %v111
    %vm116 = vcmp.eq.s32.totalorder %v97, %v111
    %vm117 = vcmp.eq.s32.totalorder %v98, %v111
    %vm118 = vcmp.eq.s32.totalorder %v99, %v111
    %vm119 = vcmp.eq.s32.totalorder %v100, %v111
    %vm120 = vcmp.eq.s32.totalorder %v101, %v111
    %vm121 = vcmp.eq.s32.totalorder %v102, %v111
    %vm122 = vcmp.eq.s32.totalorder %v103, %v111
    %vm123 = vcmp.eq.s32.totalorder %v104, %v111
    %vm124 = vcmp.eq.s32.totalorder %v105, %v111
    %vm125 = vcmp.eq.s32.totalorder %v106, %v111
    %vm126 = vcmp.eq.s32.totalorder %v107, %v111
    %vm127 = vcmp.eq.s32.totalorder %v108, %v111
    %v128 = vsel %vm112, 1.0, 0.0
    %v129 = vsel %vm113, 1.0, 0.0
    %v130 = vsel %vm114, 1.0, 0.0
    %v131 = vsel %vm115, 1.0, 0.0
    %v132 = vsel %vm116, 1.0, 0.0
    %v133 = vsel %vm117, 1.0, 0.0
    %v134 = vsel %vm118, 1.0, 0.0
    %v135 = vsel %vm119, 1.0, 0.0
    %v136 = vsel %vm120, 1.0, 0.0
    %v137 = vsel %vm121, 1.0, 0.0
    %v138 = vsel %vm122, 1.0, 0.0
    %v139 = vsel %vm123, 1.0, 0.0
    %v140 = vsel %vm124, 1.0, 0.0
    %v141 = vsel %vm125, 1.0, 0.0
    %v142 = vsel %vm126, 1.0, 0.0
    %v143 = vsel %vm127, 1.0, 0.0
    %144 = vmatprep.subr.mxu0 0.0
    %145 = vmatpush1.msra.mxu0 %v128
    %146 = vmatprep.subr.mxu0 0.0
    %147 = vmatpush1.msra.mxu0 %v129
    %148 = vmatprep.subr.mxu0 0.0
    %149 = vmatpush1.msra.mxu0 %v130
    %150 = vmatprep.subr.mxu0 0.0
    %151 = vmatpush1.msra.mxu0 %v131
    %152 = vmatprep.subr.mxu0 0.0
    %153 = vmatpush1.msra.mxu0 %v132
    %154 = vmatprep.subr.mxu0 0.0
    %155 = vmatpush1.msra.mxu0 %v133
    %156 = vmatprep.subr.mxu0 0.0
    %157 = vmatpush1.msra.mxu0 %v134
    %158 = vmatprep.subr.mxu0 0.0
    %159 = vmatpush1.msra.mxu0 %v135
    %160 = vmatprep.subr.mxu0 0.0
    %161 = vmatpush1.msra.mxu0 %v136
    %162 = vmatprep.subr.mxu0 0.0
    %163 = vmatpush1.msra.mxu0 %v137
    %164 = vmatprep.subr.mxu0 0.0
    %165 = vmatpush1.msra.mxu0 %v138
    %166 = vmatprep.subr.mxu0 0.0
    %167 = vmatpush1.msra.mxu0 %v139
    %168 = vmatprep.subr.mxu0 0.0
    %169 = vmatpush1.msra.mxu0 %v140
    %170 = vmatprep.subr.mxu0 0.0
    %171 = vmatpush1.msra.mxu0 %v141
    %172 = vmatprep.subr.mxu0 0.0
    %173 = vmatpush1.msra.mxu0 %v142
    %174 = vmatprep.subr.mxu0 0.0
    %175 = vmatpush1.msra.mxu0 %v143
    %176 = vmatprep.subr.mxu0 0.0
    %177 = vmatpush1.msra.mxu0 0.0
    %178 = vmatprep.subr.mxu0 0.0
    %179 = vmatpush1.msra.mxu0 0.0
    %180 = vmatprep.subr.mxu0 0.0
    %181 = vmatpush1.msra.mxu0 0.0
    %182 = vmatprep.subr.mxu0 0.0
    %183 = vmatpush1.msra.mxu0 0.0
    %184 = vmatprep.subr.mxu0 0.0
    %185 = vmatpush1.msra.mxu0 0.0
    %186 = vmatprep.subr.mxu0 0.0
    %187 = vmatpush1.msra.mxu0 0.0
    %188 = vmatprep.subr.mxu0 0.0
    %189 = vmatpush1.msra.mxu0 0.0
    %190 = vmatprep.subr.mxu0 0.0
    %191 = vmatpush1.msra.mxu0 0.0
    %192 = vmatprep.subr.mxu0 0.0
    %193 = vmatpush1.msra.mxu0 0.0
    %194 = vmatprep.subr.mxu0 0.0
    %195 = vmatpush1.msra.mxu0 0.0
    %196 = vmatprep.subr.mxu0 0.0
    %197 = vmatpush1.msra.mxu0 0.0
    %198 = vmatprep.subr.mxu0 0.0
    %199 = vmatpush1.msra.mxu0 0.0
    %200 = vmatprep.subr.mxu0 0.0
    %201 = vmatpush1.msra.mxu0 0.0
    %202 = vmatprep.subr.mxu0 0.0
    %203 = vmatpush1.msra.mxu0 0.0
    %204 = vmatprep.subr.mxu0 0.0
    %205 = vmatpush1.msra.mxu0 0.0
    %206 = vmatprep.subr.mxu0 0.0
    %207 = vmatpush1.msra.mxu0 0.0
    %208 = vmatprep.mubr.f32.mxu0 0.0
    %209 = vmatmul.mubr.f32.gmra.mrb[0].mxu0 %v23
    %v210 = vpop.f32.mrb[0].mxu0
    %v211 = vadd.f32 0.0, %v210
    %v212 = vpop.f32.mrb[0].mxu0
    %213 = vmatprep.mubr.f32.mxu0 0.0
    %214 = vmatmul.mubr.f32.gmra.mrb[0].mxu0 %v24
    %v215 = vpop.f32.mrb[0].mxu0
    %v216 = vadd.f32 0.0, %v215
    %v217 = vpop.f32.mrb[0].mxu0
    %218 = vdwg.mxu0
    %vm219 = vcmask 130048
    %v221 = vsel %vm219, %v128, 0
    %v224 = vsel %vm219, %v129, 0
    %226 = vmatprep.subr.mxu0 0.0
    %227 = vmatpush1.msra.mxu0 %v211
    %228 = vmatprep.subr.mxu0 0.0
    %229 = vmatpush1.msra.mxu0 %v216
    %230 = vmatprep.subr.mxu0 0.0
    %231 = vmatpush1.msra.mxu0 0.0
    %232 = vmatprep.subr.mxu0 0.0
    %233 = vmatpush1.msra.mxu0 0.0
    %234 = vmatprep.subr.mxu0 0.0
    %235 = vmatpush1.msra.mxu0 0.0
    %236 = vmatprep.subr.mxu0 0.0
    %237 = vmatpush1.msra.mxu0 0.0
    %238 = vmatprep.subr.mxu0 0.0
    %239 = vmatpush1.msra.mxu0 0.0
    %240 = vmatprep.subr.mxu0 0.0
    %241 = vmatpush1.msra.mxu0 0.0
    %242 = vmatprep.subr.mxu0 0.0
    %243 = vmatpush1.msra.mxu0 0.0
    %244 = vmatprep.subr.mxu0 0.0
    %245 = vmatpush1.msra.mxu0 0.0
    %246 = vmatprep.subr.mxu0 0.0
    %247 = vmatpush1.msra.mxu0 0.0
    %248 = vmatprep.subr.mxu0 0.0
    %249 = vmatpush1.msra.mxu0 0.0
    %250 = vmatprep.subr.mxu0 0.0
    %251 = vmatpush1.msra.mxu0 0.0
    %252 = vmatprep.subr.mxu0 0.0
    %253 = vmatpush1.msra.mxu0 0.0
    %254 = vmatprep.subr.mxu0 0.0
    %255 = vmatpush1.msra.mxu0 0.0
    %256 = vmatprep.subr.mxu0 0.0
    %257 = vmatpush1.msra.mxu0 0.0
    %258 = vmatprep.subr.mxu0 0.0
    %259 = vmatpush1.msra.mxu0 0.0
    %260 = vmatprep.subr.mxu0 0.0
    %261 = vmatpush1.msra.mxu0 0.0
    %262 = vmatprep.subr.mxu0 0.0
    %263 = vmatpush1.msra.mxu0 0.0
    %264 = vmatprep.subr.mxu0 0.0
    %265 = vmatpush1.msra.mxu0 0.0
    %266 = vmatprep.subr.mxu0 0.0
    %267 = vmatpush1.msra.mxu0 0.0
    %268 = vmatprep.subr.mxu0 0.0
    %269 = vmatpush1.msra.mxu0 0.0
    %270 = vmatprep.subr.mxu0 0.0
    %271 = vmatpush1.msra.mxu0 0.0
    %272 = vmatprep.subr.mxu0 0.0
    %273 = vmatpush1.msra.mxu0 0.0
    %274 = vmatprep.subr.mxu0 0.0
    %275 = vmatpush1.msra.mxu0 0.0
    %276 = vmatprep.subr.mxu0 0.0
    %277 = vmatpush1.msra.mxu0 0.0
    %278 = vmatprep.subr.mxu0 0.0
    %279 = vmatpush1.msra.mxu0 0.0
    %280 = vmatprep.subr.mxu0 0.0
    %281 = vmatpush1.msra.mxu0 0.0
    %282 = vmatprep.subr.mxu0 0.0
    %283 = vmatpush1.msra.mxu0 0.0
    %284 = vmatprep.subr.mxu0 0.0
    %285 = vmatpush1.msra.mxu0 0.0
    %286 = vmatprep.subr.mxu0 0.0
    %287 = vmatpush1.msra.mxu0 0.0
    %288 = vmatprep.subr.mxu0 0.0
    %289 = vmatpush1.msra.mxu0 0.0
    %290 = vmatprep.mubr.f32.mxu0 0.0
    %291 = vmatmul.mubr.f32.gmra.mrb[0].mxu0 %v221
    %v292 = vpop.f32.mrb[0].mxu0
    %v293 = vadd.f32 1e-05, %v292
    %v294 = vpop.f32.mrb[0].mxu0
    %295 = vmatprep.mubr.f32.mxu0 0.0
    %296 = vmatmul.mubr.f32.gmra.mrb[0].mxu0 %v224
    %v297 = vpop.f32.mrb[0].mxu0
    %v298 = vadd.f32 1e-05, %v297
    %v299 = vpop.f32.mrb[0].mxu0
    %300 = vdwg.mxu0
    %v301 = vrcp.pop %v293
    %v302 = vrcp.pop %v298
    %v303 = vmul.f32 %v23, %v301
    %v304 = vmul.f32 %v24, %v302
    %305 = vst [vmem:[#allocation5] sm:$0xff] %v303
    %306 = vst [vmem:[#allocation5 + $0x8] sm:$0xff] %v304
    // Predicated region
    $region10: #{tpu_custom_call.1} parent=1 // pred_check
      _
    $region11: #{tpu_custom_call.1} parent=1 // pred_check_branch
      %308 = sbr.rel (0) target = $region13
    $region12: #{tpu_custom_call.1} parent=1 // pred_region
      %s310 = ssub.s32 256, 256
      %311 = vsyncadd [#allocation4], %s310
      %s312 = sshll.u32 [#allocation5], 4
      %s313 = int_to_ptr.vmem [resolvable:$true] %s312
      %318 = dma.vmem_to_hbm [thread:$0]  %s313, 256, %s1, [#allocation4], 128, 128, 8
    $region13: #{tpu_custom_call.1} parent=1 // pred_fallthru
      _
    // Predicated region
    $region14: #{tpu_custom_call.1} parent=1 // pred_check
      _
    $region15: #{tpu_custom_call.1} parent=1 // pred_check_branch
      %320 = sbr.rel (0) target = $region17
    $region16: #{tpu_custom_call.1} parent=1 // pred_region
      %321 = dma.done [#allocation4], 256
    $region17: #{tpu_custom_call.1} parent=1 // pred_fallthru
      _
    %322 = vsyncpa [#allocation3], 1
    %323 = vsyncpa [#allocation4], 1

</llo_original>
